<compile_context>
chip_gen: v5e
topology: v5e:2x2
jax: 0.10.0
libtpu: 0.0.40
codegen_flags: <defaults>
</compile_context>

<pallas_src>
import numpy as np
import jax
import jax.numpy as jnp
from jax.experimental import pallas as pl
from jax.experimental.pallas import tpu as pltpu

# ---- synthetic "dynamics" (damped pendulum, explicit Euler) + observation ----
NX, NU, NY = 2, 1, 2
NF = NX + NU + NY            # merged input feature channels (z0, u, y)
DT = 0.05
GRAV = 9.81
LENGTH = 1.0
MASS = 1.0
DAMPING = 0.1

# EKF hyper-parameters (module defaults)
GAMMA = 0.0          # unused in forward() (only in forward_varying_p)
DELTA = 1e-3
LAM = 0.0
ALPHA = 1.1

# layout constants
LANE = 128           # batch maps onto lanes ...
SUBLANE = 8          # ... and sublanes: each feature channel is an (R, 128) slab
MAX_TILE_ROWS = 2048  # sublane rows per grid step (2048*128 = 262144 batch / tile)


# ---------------- plain numpy versions (used for P0 init + reference) --------
def _f_np(z, u):
    th, om = z[..., 0], z[..., 1]
    th1 = th + DT * om
    om1 = om + DT * (-(GRAV / LENGTH) * np.sin(th) - DAMPING * om
                     + u[..., 0] / (MASS * LENGTH ** 2))
    return np.stack([th1, om1], axis=-1)


def _F_np(z):
    th = z[..., 0]
    o = np.ones_like(th)
    return np.stack([
        np.stack([o, DT * o], axis=-1),
        np.stack([-DT * (GRAV / LENGTH) * np.cos(th), (1.0 - DT * DAMPING) * o],
                 axis=-1),
    ], axis=-2)


def _h_np(z):
    th = z[..., 0]
    return np.stack([np.sin(th), np.cos(th)], axis=-1)


def _H_np(z):
    th = z[..., 0]
    zr = np.zeros_like(th)
    return np.stack([
        np.stack([np.cos(th), zr], axis=-1),
        np.stack([-np.sin(th), zr], axis=-1),
    ], axis=-2)


def dare_p0():
    """self.dare(): steady-state prior covariance at the equilibrium.
    # TODO(synk): original uses scipy.linalg.solve_discrete_are; replaced by a
    # deterministic fixed-point Riccati iteration (same fixed point)."""
    x_eq = np.zeros((NX,), np.float64)
    Ad = _F_np(x_eq)
    Cd = _H_np(x_eq)
    Q = DELTA * np.eye(NX)
    R = DELTA * np.eye(NY)
    P = Q.copy()
    for _ in range(2000):
        S = Cd @ P @ Cd.T + R
        P = Ad @ P @ Ad.T + Q - Ad @ P @ Cd.T @ np.linalg.inv(S) @ Cd @ P @ Ad.T
    K = P @ Cd.T @ np.linalg.inv(Cd @ P @ Cd.T + R)
    return P.astype(np.float32), K.astype(np.float32)


# ------------------------------- Pallas kernel -------------------------------
def _make_ekf_kernel(P0):
    """Close over the fixed P0 buffer and fold the 2x2 algebra at trace time.

    With F  = [[1, dt], [a, b]],  a = -dt*(g/l)*cos(th),  b = 1 - dt*damping,
         H  = [[c1, 0], [-s1, 0]], c1 = cos(th1), s1 = sin(th1),
         P1 = alpha^2 * F P0 F^T + delta*I  (symmetric; only col 0 needed),
         S  = (1+lam) * H P1 H^T + delta*I,
    the inverse folds away analytically:
         det(S) = (1+lam)*delta*P1[0,0]*(c1^2+s1^2) + delta^2   (constant),
         K e1   = P1[:,0] * (c1*e0 - s1*e1) / ((1+lam)*P1[0,0] + delta),
    so the whole gain path is one fused multiply-add chain with compile-time
    coefficients (no reciprocal, no 2x2 inverse in-kernel).
    """
    P0 = np.asarray(P0, dtype=np.float64)
    p00, p01, p11 = float(P0[0, 0]), float(P0[0, 1]), float(P0[1, 1])
    b = 1.0 - DT * DAMPING
    a_coef = -DT * (GRAV / LENGTH)            # a = a_coef * cos(th)
    a2 = ALPHA * ALPHA
    one_lam = 1.0 + LAM
    inv_ml2 = 1.0 / (MASS * LENGTH ** 2)

    # P1[0,0] is batch-independent -> pure compile-time constant.
    p1_00 = a2 * (p00 + 2.0 * DT * p01 + DT * DT * p11) + DELTA
    # P1[0,1] = P1[1,0] = k1 * a + k2 (affine in the single varying Jacobian entry).
    k1 = a2 * (p00 + DT * p01)
    k2 = a2 * b * (p01 + DT * p11)

    # Analytic S^{-1} fold: gain scale is a compile-time constant.
    ginv = 1.0 / (one_lam * p1_00 + DELTA)
    c0 = p1_00 * ginv          # z1[0] correction coefficient
    k1g = k1 * ginv            # z1[1] correction: (k1g * a + k2g) * corr
    k2g = k2 * ginv

    def kernel(in_ref, z1_ref):
        # Single merged (NF, tr, 128) slab: one DMA stream; each channel read
        # is a dense (tr, 128) slab with batch on sublanes+lanes.
        th = in_ref[0]
        om = in_ref[1]
        uu = in_ref[2]
        y0 = in_ref[3]
        y1 = in_ref[4]

        sin_th = jnp.sin(th)
        cos_th = jnp.cos(th)

        # z1_prior = dynamics(z0, u)
        th1 = th + DT * om
        om1 = om + DT * (-(GRAV / LENGTH) * sin_th - DAMPING * om + uu * inv_ml2)

        # Observation linearization at z1_prior; innovation folded into corr.
        s1 = jnp.sin(th1)
        c1 = jnp.cos(th1)
        corr = c1 * (y0 - s1) - s1 * (y1 - c1)

        # Dense, unmasked (tr, 128) slab stores per state channel.
        z1_ref[0] = th1 + c0 * corr
        z1_ref[1] = om1 + (k1g * (a_coef * cos_th) + k2g) * corr

    return kernel


def ekf_observer_forward_slabs(in_slabs, P0, *, tile_rows=None):
    """Slab-layout forward (layout-native entry point; no repack).

    in_slabs: (NF, R, 128) f32 with channels [theta, omega, u, y0, y1] and
    R % 8 == 0.  Returns (NX, R, 128) f32.  `tile_rows` must divide R and be a
    multiple of 8 (or equal R); pass >= 2 tiles to feed both v7x TensorCores.
    """
    nf, R, lane = in_slabs.shape
    assert nf == NF and lane == LANE and R % SUBLANE == 0
    tr = tile_rows if tile_rows is not None else min(R, MAX_TILE_ROWS)
    assert R % tr == 0 and (tr % SUBLANE == 0 or tr == R)
    grid = R // tr

    kernel = _make_ekf_kernel(P0)
    return pl.pallas_call(
        kernel,
        out_shape=jax.ShapeDtypeStruct((NX, R, LANE), jnp.float32),
        grid_spec=pltpu.PrefetchScalarGridSpec(
            num_scalar_prefetch=0,
            grid=(grid,),
            in_specs=[
                pl.BlockSpec((NF, tr, LANE), lambda i: (0, i, 0)),
            ],
            out_specs=pl.BlockSpec((NX, tr, LANE), lambda i: (0, i, 0)),
        ),
        compiler_params=pltpu.CompilerParams(
            dimension_semantics=("parallel",),      # megacore sharding on v7x
            # 7 channels * tr(<=2048) * 128 * 4 B * 2 buffers ~= 14.7 MiB max;
            # explicit limit clears v5e's 16 MiB scoped default.
            vmem_limit_bytes=32 * 1024 * 1024,
        ),
    )(in_slabs)


def _round_up(x, m):
    return (x + m - 1) // m * m


def _cdiv(a, b):
    return -(-a // b)


def _choose_tiling(B):
    """Pick (R, tile_rows, grid): R % tile_rows == 0, tile_rows % 8 == 0,
    tile_rows <= MAX_TILE_ROWS, and grid >= 2 whenever possible (v7x megacore)."""
    r_raw = max(_cdiv(B, LANE), 1)
    R0 = _round_up(r_raw, SUBLANE)
    if R0 <= SUBLANE:
        return R0, R0, 1
    grid = max(2, _cdiv(R0, MAX_TILE_ROWS))
    tr = _round_up(_cdiv(R0, grid), SUBLANE)
    return grid * tr, tr, grid


def ekf_observer_forward(z0, u, y, P0):
    """EKFObserver.forward.  z0:(B,NX), u:(B,NU), y:(B,NY) -> z1:(B,NX).

    Compatibility wrapper: one concat + one pad + one transpose to the merged
    (NF, R, 128) slab layout.  Callers that can produce/consume the slab layout
    upstream should use ekf_observer_forward_slabs directly and skip the repack
    (the repack round-trips HBM more than the kernel itself)."""
    B = z0.shape[0]
    R, tr, _grid = _choose_tiling(B)
    b_pad = R * LANE

    feats = jnp.concatenate(
        [z0.astype(jnp.float32), u.astype(jnp.float32), y.astype(jnp.float32)],
        axis=-1)                                        # (B, NF)
    feats = jnp.pad(feats, ((0, b_pad - B), (0, 0)))    # single pad
    in_slabs = feats.T.reshape(NF, R, LANE)             # single materialized repack

    z1_s = ekf_observer_forward_slabs(in_slabs, P0, tile_rows=tr)
    return z1_s.reshape(NX, b_pad).T[:B]


# ------------------------------ numpy reference ------------------------------
def ekf_reference(z0, u, y, P0):
    B = z0.shape[0]
    Pk = np.broadcast_to(P0, (B, NX, NX)).astype(np.float32)
    z1_prior = _f_np(z0, u)
    Fk = _F_np(z0)
    e1 = (y - _h_np(z1_prior))[..., None]
    H1 = _H_np(z1_prior)
    P1 = ALPHA ** 2 * Fk @ Pk @ np.swapaxes(Fk, 1, 2) + DELTA * np.eye(NX, dtype=np.float32)
    HPHt = H1 @ P1 @ np.swapaxes(H1, 1, 2)
    R1 = LAM * HPHt + DELTA * np.eye(NY, dtype=np.float32)
    K1 = P1 @ np.swapaxes(H1, 1, 2) @ np.linalg.inv(HPHt + R1)
    return z1_prior + (K1 @ e1)[..., 0]


if __name__ == "__main__":
    P0_np, _K0 = dare_p0()   # deterministic parameter init (module buffer P0)
    P0 = jnp.asarray(P0_np)

    key = jax.random.PRNGKey(0)
    # 3: tiny batch; 200: lane padding; 2048: 16 sublane rows -> grid=2 (both v7x TCs)
    for B in (3, 200, 2048):
        key, k1, k2, k3 = jax.random.split(key, 4)
        z0 = jax.random.normal(k1, (B, NX), jnp.float32)
        u = jax.random.normal(k2, (B, NU), jnp.float32)
        y = jax.random.normal(k3, (B, NY), jnp.float32)

        z1 = ekf_observer_forward(z0, u, y, P0)
        z1 = jax.block_until_ready(z1)

        z1_ref = ekf_reference(np.asarray(z0), np.asarray(u), np.asarray(y), P0_np)
        np.testing.assert_allclose(np.asarray(z1), z1_ref, rtol=1e-4, atol=1e-4)

    print("KERNEL_OK")
</pallas_src>

<mosaic_0001>
module attributes {stable_mosaic.version = 11 : i64} {
  func.func @kernel(%arg0: i32, %arg1: memref<5x8x128xf32, #tpu.memory_space<vmem>>, %arg2: memref<2x8x128xf32, #tpu.memory_space<vmem>>) attributes {dimension_semantics = [#tpu.dimension_semantics<parallel>], iteration_bounds = array<i64: 1>, scalar_prefetch = 0 : i64, scratch_operands = 0 : i64, tpu.core_type = #tpu.core_type<tc>, window_params = [{transform_indices = @transform_0, window_bounds = array<i64: 5, 8, 128>}, {transform_indices = @transform_1, window_bounds = array<i64: 2, 8, 128>}]} {
    %c0 = arith.constant 0 : index
    %c0_0 = arith.constant 0 : index
    %c0_1 = arith.constant 0 : index
    %0 = vector.load %arg1[%c0, %c0_0, %c0_1] : memref<5x8x128xf32, #tpu.memory_space<vmem>>, vector<1x8x128xf32>
    %1 = vector.shape_cast %0 : vector<1x8x128xf32> to vector<8x128xf32>
    %c1 = arith.constant 1 : index
    %c0_2 = arith.constant 0 : index
    %c0_3 = arith.constant 0 : index
    %2 = vector.load %arg1[%c1, %c0_2, %c0_3] : memref<5x8x128xf32, #tpu.memory_space<vmem>>, vector<1x8x128xf32>
    %3 = vector.shape_cast %2 : vector<1x8x128xf32> to vector<8x128xf32>
    %c2 = arith.constant 2 : index
    %c0_4 = arith.constant 0 : index
    %c0_5 = arith.constant 0 : index
    %4 = vector.load %arg1[%c2, %c0_4, %c0_5] : memref<5x8x128xf32, #tpu.memory_space<vmem>>, vector<1x8x128xf32>
    %5 = vector.shape_cast %4 : vector<1x8x128xf32> to vector<8x128xf32>
    %c3 = arith.constant 3 : index
    %c0_6 = arith.constant 0 : index
    %c0_7 = arith.constant 0 : index
    %6 = vector.load %arg1[%c3, %c0_6, %c0_7] : memref<5x8x128xf32, #tpu.memory_space<vmem>>, vector<1x8x128xf32>
    %7 = vector.shape_cast %6 : vector<1x8x128xf32> to vector<8x128xf32>
    %c4 = arith.constant 4 : index
    %c0_8 = arith.constant 0 : index
    %c0_9 = arith.constant 0 : index
    %8 = vector.load %arg1[%c4, %c0_8, %c0_9] : memref<5x8x128xf32, #tpu.memory_space<vmem>>, vector<1x8x128xf32>
    %9 = vector.shape_cast %8 : vector<1x8x128xf32> to vector<8x128xf32>
    %10 = math.sin %1 : vector<8x128xf32>
    %11 = math.cos %1 : vector<8x128xf32>
    %cst = arith.constant 5.000000e-02 : f32
    %12 = vector.broadcast %cst : f32 to vector<8x128xf32>
    %13 = arith.mulf %12, %3 : vector<8x128xf32>
    %14 = arith.addf %1, %13 : vector<8x128xf32>
    %cst_10 = arith.constant -9.810000e+00 : f32
    %15 = vector.broadcast %cst_10 : f32 to vector<8x128xf32>
    %16 = arith.mulf %15, %10 : vector<8x128xf32>
    %cst_11 = arith.constant 1.000000e-01 : f32
    %17 = vector.broadcast %cst_11 : f32 to vector<8x128xf32>
    %18 = arith.mulf %17, %3 : vector<8x128xf32>
    %19 = arith.subf %16, %18 : vector<8x128xf32>
    %cst_12 = arith.constant 1.000000e+00 : f32
    %20 = vector.broadcast %cst_12 : f32 to vector<8x128xf32>
    %21 = arith.mulf %5, %20 : vector<8x128xf32>
    %22 = arith.addf %19, %21 : vector<8x128xf32>
    %cst_13 = arith.constant 5.000000e-02 : f32
    %23 = vector.broadcast %cst_13 : f32 to vector<8x128xf32>
    %24 = arith.mulf %23, %22 : vector<8x128xf32>
    %25 = arith.addf %3, %24 : vector<8x128xf32>
    %26 = math.sin %14 : vector<8x128xf32>
    %27 = math.cos %14 : vector<8x128xf32>
    %28 = arith.subf %7, %26 : vector<8x128xf32>
    %29 = arith.mulf %27, %28 : vector<8x128xf32>
    %30 = arith.subf %9, %27 : vector<8x128xf32>
    %31 = arith.mulf %26, %30 : vector<8x128xf32>
    %32 = arith.subf %29, %31 : vector<8x128xf32>
    %cst_14 = arith.constant 0.767712414 : f32
    %33 = vector.broadcast %cst_14 : f32 to vector<8x128xf32>
    %34 = arith.mulf %33, %32 : vector<8x128xf32>
    %35 = arith.addf %14, %34 : vector<8x128xf32>
    %c0_15 = arith.constant 0 : index
    %c0_16 = arith.constant 0 : index
    %c0_17 = arith.constant 0 : index
    %36 = vector.load %arg2[%c0_15, %c0_16, %c0_17] : memref<2x8x128xf32, #tpu.memory_space<vmem>>, vector<1x8x128xf32>
    %37 = vector.shape_cast %36 : vector<1x8x128xf32> to vector<8x128xf32>
    %38 = vector.shape_cast %35 : vector<8x128xf32> to vector<1x8x128xf32>
    tpu.vector_store %arg2[%c0_15, %c0_16, %c0_17], %38 {strides = array<i32>} : memref<2x8x128xf32, #tpu.memory_space<vmem>>, vector<1x8x128xf32>,
    %cst_18 = arith.constant -4.905000e-01 : f32
    %39 = vector.broadcast %cst_18 : f32 to vector<8x128xf32>
    %40 = arith.mulf %39, %11 : vector<8x128xf32>
    %cst_19 = arith.constant 0.503240407 : f32
    %41 = vector.broadcast %cst_19 : f32 to vector<8x128xf32>
    %42 = arith.mulf %41, %40 : vector<8x128xf32>
    %cst_20 = arith.constant 0.640470802 : f32
    %43 = vector.broadcast %cst_20 : f32 to vector<8x128xf32>
    %44 = arith.addf %42, %43 : vector<8x128xf32>
    %45 = arith.mulf %44, %32 : vector<8x128xf32>
    %46 = arith.addf %25, %45 : vector<8x128xf32>
    %c1_21 = arith.constant 1 : index
    %c0_22 = arith.constant 0 : index
    %c0_23 = arith.constant 0 : index
    %47 = vector.load %arg2[%c1_21, %c0_22, %c0_23] : memref<2x8x128xf32, #tpu.memory_space<vmem>>, vector<1x8x128xf32>
    %48 = vector.shape_cast %47 : vector<1x8x128xf32> to vector<8x128xf32>
    %49 = vector.shape_cast %46 : vector<8x128xf32> to vector<1x8x128xf32>
    tpu.vector_store %arg2[%c1_21, %c0_22, %c0_23], %49 {strides = array<i32>} : memref<2x8x128xf32, #tpu.memory_space<vmem>>, vector<1x8x128xf32>,
    return
  }
  func.func @transform_0(%arg0: i32) -> (i32, i32, i32) {
    %c0_i32 = arith.constant 0 : i32
    %c0_i32_0 = arith.constant 0 : i32
    %c0_i32_1 = arith.constant 0 : i32
    return %c0_i32, %arg0, %c0_i32_0 : i32, i32, i32
  }
  func.func @transform_1(%arg0: i32) -> (i32, i32, i32) {
    %c0_i32 = arith.constant 0 : i32
    %c0_i32_0 = arith.constant 0 : i32
    %c0_i32_1 = arith.constant 0 : i32
    return %c0_i32, %arg0, %c0_i32_0 : i32, i32, i32
  }
}

</mosaic_0001>

<llo_original>
// kernel: tpu_custom_call.1
$region0: #{tpu_custom_call.1}
  #allocation0 [shape = 'u32[]', space=smem, size = 0x4, offset = 0x4, fixed_abs, tag = 'smem constant byte address 0x4 - core index']
  #allocation1 [shape = 'u32[72,128]{1,0:T(1,128)}', space=vmem, size = 0x9000, scoped, tag = 'internal scratch']
  %s0 = inlined_call_operand.hbm [shape: f32[5,8,128], index: 0, kind: input, shape index: {}]
  %s1 = inlined_call_operand.hbm [shape: f32[2,8,128], index: 1, kind: output, shape index: {}]
  %s2 = sld [smem:[#allocation0]]
  $region18: #{tpu_custom_call.1} parent=0
    _
  %s4 = ssub.s32 1, %s2
  %s5 = scalar_select 0, %s4, %s2
  $region1: #{tpu_custom_call.1} parent=0
    #allocation2 [shape = 'u8[20480]{0}', space=vmem, size = 0x5000, scoped, tag = 'input window, operand 0, single buffered']
    #allocation3 [shape = 's32[1]{0}', space=sflag, size = 0x4, scoped, tag = 'scoped memory for tpu_custom_call.1']
    #allocation4 [shape = 's32[1]{0}', space=sflag, size = 0x4, scoped, tag = 'scoped memory for tpu_custom_call.1']
    #allocation5 [shape = 'u8[8192]{0}', space=vmem, size = 0x2000, scoped, tag = 'output window, operand 0, single buffered']
    %6 = vsyncpa [#allocation3], 0
    %7 = vsyncpa [#allocation4], 0
    // Predicated region
    $region2: #{tpu_custom_call.1} parent=1 // pred_check
      _
    $region3: #{tpu_custom_call.1} parent=1 // pred_check_branch
      %9 = sbr.rel (0) target = $region5
    $region4: #{tpu_custom_call.1} parent=1 // pred_region
      %11 = vsyncadd [#allocation3], 0
      %s12 = sshll.u32 %s0, 4
      %s13 = int_to_ptr.hbm [resolvable:$true] %s12
      %s14 = sshll.u32 [#allocation2], 4
      %s15 = int_to_ptr.vmem [resolvable:$true] %s14
      %20 = dma.hbm_to_vmem [thread:$0]  %s13, 640, %s15, [#allocation3], 128, 128, 8
    $region5: #{tpu_custom_call.1} parent=1 // pred_fallthru
      _
    // Predicated region
    $region6: #{tpu_custom_call.1} parent=1 // pred_check
      _
    $region7: #{tpu_custom_call.1} parent=1 // pred_check_branch
      %22 = sbr.rel (0) target = $region9
    $region8: #{tpu_custom_call.1} parent=1 // pred_region
      %24 = dma.done [#allocation3], 640
    $region9: #{tpu_custom_call.1} parent=1 // pred_fallthru
      _
    %v25 = vld [vmem:[#allocation2] sm:$0xff]
    %s26 = scalar_lea.vmem [#allocation2], 8
    %v27 = vld [vmem:[%s26] sm:$0xff]
    %s28 = scalar_lea.vmem [#allocation2], 16
    %v29 = vld [vmem:[%s28] sm:$0xff]
    %s30 = scalar_lea.vmem [#allocation2], 24
    %v31 = vld [vmem:[%s30] sm:$0xff]
    %s32 = scalar_lea.vmem [#allocation2], 32
    %v33 = vld [vmem:[%s32] sm:$0xff]
    %v34 = vand.u32 2147483647, %v25
    %vm35 = vcmp.le.f32.partialorder %v34, 0.7853982
    %vm36 = vcmp.lt.s32.totalorder %v25, 0
    %v37 = vand.u32 %v25, 2139095040
    %v38 = vshrl.u32 %v37, 23
    %v39 = vsub.s32 %v38, 127
    %v40 = vand.u32 2147483647, %v25
    %v41 = vand.u32 %v40, 8388607
    %v42 = vor.u32 %v41, 8388608
    %v43 = vsub.s32 0, %v42
    %v44 = vadd.s32 %v39, 1
    %vm45 = vcmp.gt.s32.totalorder %v44, 0
    %v46 = vsel %vm45, %v44, 0
    %v47 = vshrl.u32 %v46, 5
    %v48 = vand.u32 %v46, 31
    %v49 = vsub.s32 32, %v48
    %v50 = vshrl.u32 683565275, %v49
    %v51 = vshll.u32 683565275, %v48
    %v52 = vshrl.u32 2475754826, %v49
    %v53 = vor.u32 %v51, %v52
    %v54 = vshll.u32 2475754826, %v48
    %v55 = vshrl.u32 2131351028, %v49
    %v56 = vor.u32 %v54, %v55
    %v57 = vshll.u32 2131351028, %v48
    %v58 = vshrl.u32 2102212464, %v49
    %v59 = vor.u32 %v57, %v58
    %v60 = vshll.u32 2102212464, %v48
    %v61 = vshrl.u32 920167782, %v49
    %v62 = vor.u32 %v60, %v61
    %v63 = vshll.u32 920167782, %v48
    %v64 = vshrl.u32 1326507024, %v49
    %v65 = vor.u32 %v63, %v64
    %vm66 = vcmp.lt.s32.totalorder %v47, 1
    %vm67 = vcmp.lt.s32.totalorder %v47, 2
    %vm68 = vcmp.lt.s32.totalorder %v47, 3
    %vm69 = vcmp.lt.s32.totalorder %v47, 4
    %v70 = vsel %vm66, %v50, %v53
    %v71 = vsel %vm69, %v59, 2102212464
    %v72 = vsel %vm68, %v56, %v71
    %v73 = vsel %vm67, %v70, %v72
    %v74 = vsel %vm66, %v53, %v56
    %v75 = vsel %vm69, %v62, 920167782
    %v76 = vsel %vm68, %v59, %v75
    %v77 = vsel %vm67, %v74, %v76
    %v78 = vsel %vm66, %v56, %v59
    %v79 = vsel %vm69, %v65, 1326507024
    %v80 = vsel %vm68, %v62, %v79
    %v81 = vsel %vm67, %v78, %v80
    %v82 = vshll.u32 %v42, 8
    %v83 = vand.u32 %v82, 65535
    %v84 = vshrl.u32 %v82, 16
    %v85 = vand.u32 %v81, 65535
    %v86 = vshrl.u32 %v81, 16
    %v87 = vmul.u32 %v83, %v85
    %v88 = vmul.u32 %v83, %v86
    %v89 = vmul.u32 %v84, %v85
    %v90 = vmul.u32 %v84, %v86
    %v91 = vshll.u32 %v88, 16
    %v92 = vshrl.u32 %v88, 16
    %v93 = vshll.u32 %v89, 16
    %v94 = vshrl.u32 %v89, 16
    %vm95 = vc.u32 %v87, %v91
    %v96 = vsel %vm95, 1, 0
    %v97 = vadd.s32 %v87, %v91
    %v98 = vadd.s32 %v90, %v96
    %vm99 = vc.u32 %v97, %v93
    %v100 = vsel %vm99, 1, 0
    %v101 = vadd.s32 %v97, %v93
    %v102 = vadd.s32 %v98, %v100
    %v103 = vadd.s32 %v102, %v92
    %v104 = vadd.s32 %v103, %v94
    %v105 = vand.u32 %v82, 65535
    %v106 = vshrl.u32 %v82, 16
    %v107 = vand.u32 %v77, 65535
    %v108 = vshrl.u32 %v77, 16
    %v109 = vmul.u32 %v105, %v107
    %v110 = vmul.u32 %v105, %v108
    %v111 = vmul.u32 %v106, %v107
    %v112 = vmul.u32 %v106, %v108
    %v113 = vshll.u32 %v110, 16
    %v114 = vshrl.u32 %v110, 16
    %v115 = vshll.u32 %v111, 16
    %v116 = vshrl.u32 %v111, 16
    %vm117 = vc.u32 %v109, %v113
    %v118 = vsel %vm117, 1, 0
    %v119 = vadd.s32 %v109, %v113
    %v120 = vadd.s32 %v112, %v118
    %vm121 = vc.u32 %v119, %v115
    %v122 = vsel %vm121, 1, 0
    %v123 = vadd.s32 %v119, %v115
    %v124 = vadd.s32 %v120, %v122
    %v125 = vadd.s32 %v124, %v114
    %v126 = vadd.s32 %v125, %v116
    %v127 = vmul.u32 %v82, %v73
    %v128 = vadd.s32 %v104, %v123
    %vm129 = vc.u32 %v104, %v123
    %v130 = vadd.s32 %v126, 1
    %v131 = vsel %vm129, %v130, %v126
    %v132 = vadd.s32 %v127, %v131
    %v133 = vadd.s32 %v132, 536870912
    %v134 = vshrl.u32 %v133, 30
    %v135 = vshll.u32 %v134, 30
    %v136 = vsub.s32 %v132, %v135
    %vm137 = vcmp.lt.s32.totalorder %v136, 0
    %v138 = vsub.s32 0, %v136
    %v139 = vsel %vm137, %v138, %v136
    %v140 = vclz %v139
    %v141 = vsub.s32 %v140, 2
    %vm142 = vcmp.gt.s32.totalorder 0, %v141
    %v143 = vsel %vm142, 0, %v141
    %v144 = vsub.s32 32, %v143
    %v145 = vshll.u32 %v136, %v143
    %v146 = vshrl.u32 %v128, %v144
    %v147 = vor.u32 %v145, %v146
    %v148 = vsub.s32 4294967266, %v143
    %v149 = vadd.s32 %v148, 127
    %v150 = vshll.u32 %v149, 23
    %v151 = vor.u32 4788187, %v150
    %v152 = vand.u32 2147483647, %v151
    %v154 = vcvt.s32.f32 %v147
    %v155 = vmul.f32 %v154, %v152
    %v156 = vxor.u32 %v155, 2147483648
    %v157 = vsel %vm36, %v156, %v155
    %v158 = vsub.s32 4, %v134
    %v159 = vsel %vm36, %v158, %v134
    %v160 = vsel %vm35, %v25, %v157
    %v161 = vsel %vm35, 0, %v159
    %v162 = vmul.f32 %v160, %v160
    %v163 = vmul.f32 %v162, -0.001358992
    %v164 = vadd.f32 %v163, 0.041655596
    %v165 = vmul.f32 %v162, %v164
    %v166 = vadd.f32 %v165, -0.4999988
    %v167 = vmul.f32 %v162, %v166
    %v168 = vadd.f32 1.0, %v167
    %v169 = vmul.f32 %v160, %v160
    %v170 = vmul.f32 %v169, -0.00019511016
    %v171 = vadd.f32 %v170, 0.008332121
    %v172 = vmul.f32 %v169, %v171
    %v173 = vadd.f32 %v172, -0.16666654
    %v174 = vmul.f32 %v169, %v173
    %v175 = vadd.f32 %v174, 1.0
    %v176 = vmul.f32 %v175, %v160
    %vm177 = vweird.f32 %v25
    %v178 = vadd.s32 %v161, 3
    %v179 = vand.u32 %v178, 3
    %vm180 = vcmp.lt.s32.totalorder %v179, 2
    %vm181 = vcmp.eq.s32.totalorder %v179, 0
    %v182 = vxor.u32 %v176, 2147483648
    %v183 = vsel %vm181, %v168, %v182
    %vm184 = vcmp.eq.s32.totalorder %v179, 2
    %v185 = vxor.u32 %v168, 2147483648
    %v186 = vsel %vm184, %v185, %v176
    %v187 = vsel %vm180, %v183, %v186
    %v188 = vsel %vm177, nan, %v187
    %v189 = vand.u32 2147483647, %v25
    %vm190 = vcmp.le.f32.partialorder %v189, 0.7853982
    %vm191 = vcmp.lt.s32.totalorder %v25, 0
    %v192 = vand.u32 %v25, 2139095040
    %v193 = vshrl.u32 %v192, 23
    %v194 = vsub.s32 %v193, 127
    %v195 = vand.u32 2147483647, %v25
    %v196 = vand.u32 %v195, 8388607
    %v197 = vor.u32 %v196, 8388608
    %v198 = vsub.s32 0, %v197
    %v199 = vadd.s32 %v194, 1
    %vm200 = vcmp.gt.s32.totalorder %v199, 0
    %v201 = vsel %vm200, %v199, 0
    %v202 = vshrl.u32 %v201, 5
    %v203 = vand.u32 %v201, 31
    %v204 = vsub.s32 32, %v203
    %v205 = vshrl.u32 683565275, %v204
    %v206 = vshll.u32 683565275, %v203
    %v207 = vshrl.u32 2475754826, %v204
    %v208 = vor.u32 %v206, %v207
    %v209 = vshll.u32 2475754826, %v203
    %v210 = vshrl.u32 2131351028, %v204
    %v211 = vor.u32 %v209, %v210
    %v212 = vshll.u32 2131351028, %v203
    %v213 = vshrl.u32 2102212464, %v204
    %v214 = vor.u32 %v212, %v213
    %v215 = vshll.u32 2102212464, %v203
    %v216 = vshrl.u32 920167782, %v204
    %v217 = vor.u32 %v215, %v216
    %v218 = vshll.u32 920167782, %v203
    %v219 = vshrl.u32 1326507024, %v204
    %v220 = vor.u32 %v218, %v219
    %vm221 = vcmp.lt.s32.totalorder %v202, 1
    %vm222 = vcmp.lt.s32.totalorder %v202, 2
    %vm223 = vcmp.lt.s32.totalorder %v202, 3
    %vm224 = vcmp.lt.s32.totalorder %v202, 4
    %v225 = vsel %vm221, %v205, %v208
    %v226 = vsel %vm224, %v214, 2102212464
    %v227 = vsel %vm223, %v211, %v226
    %v228 = vsel %vm222, %v225, %v227
    %v229 = vsel %vm221, %v208, %v211
    %v230 = vsel %vm224, %v217, 920167782
    %v231 = vsel %vm223, %v214, %v230
    %v232 = vsel %vm222, %v229, %v231
    %v233 = vsel %vm221, %v211, %v214
    %v234 = vsel %vm224, %v220, 1326507024
    %v235 = vsel %vm223, %v217, %v234
    %v236 = vsel %vm222, %v233, %v235
    %v237 = vshll.u32 %v197, 8
    %v238 = vand.u32 %v237, 65535
    %v239 = vshrl.u32 %v237, 16
    %v240 = vand.u32 %v236, 65535
    %v241 = vshrl.u32 %v236, 16
    %v242 = vmul.u32 %v238, %v240
    %v243 = vmul.u32 %v238, %v241
    %v244 = vmul.u32 %v239, %v240
    %v245 = vmul.u32 %v239, %v241
    %v246 = vshll.u32 %v243, 16
    %v247 = vshrl.u32 %v243, 16
    %v248 = vshll.u32 %v244, 16
    %v249 = vshrl.u32 %v244, 16
    %vm250 = vc.u32 %v242, %v246
    %v251 = vsel %vm250, 1, 0
    %v252 = vadd.s32 %v242, %v246
    %v253 = vadd.s32 %v245, %v251
    %vm254 = vc.u32 %v252, %v248
    %v255 = vsel %vm254, 1, 0
    %v256 = vadd.s32 %v252, %v248
    %v257 = vadd.s32 %v253, %v255
    %v258 = vadd.s32 %v257, %v247
    %v259 = vadd.s32 %v258, %v249
    %v260 = vand.u32 %v237, 65535
    %v261 = vshrl.u32 %v237, 16
    %v262 = vand.u32 %v232, 65535
    %v263 = vshrl.u32 %v232, 16
    %v264 = vmul.u32 %v260, %v262
    %v265 = vmul.u32 %v260, %v263
    %v266 = vmul.u32 %v261, %v262
    %v267 = vmul.u32 %v261, %v263
    %v268 = vshll.u32 %v265, 16
    %v269 = vshrl.u32 %v265, 16
    %v270 = vshll.u32 %v266, 16
    %v271 = vshrl.u32 %v266, 16
    %vm272 = vc.u32 %v264, %v268
    %v273 = vsel %vm272, 1, 0
    %v274 = vadd.s32 %v264, %v268
    %v275 = vadd.s32 %v267, %v273
    %vm276 = vc.u32 %v274, %v270
    %v277 = vsel %vm276, 1, 0
    %v278 = vadd.s32 %v274, %v270
    %v279 = vadd.s32 %v275, %v277
    %v280 = vadd.s32 %v279, %v269
    %v281 = vadd.s32 %v280, %v271
    %v282 = vmul.u32 %v237, %v228
    %v283 = vadd.s32 %v259, %v278
    %vm284 = vc.u32 %v259, %v278
    %v285 = vadd.s32 %v281, 1
    %v286 = vsel %vm284, %v285, %v281
    %v287 = vadd.s32 %v282, %v286
    %v288 = vadd.s32 %v287, 536870912
    %v289 = vshrl.u32 %v288, 30
    %v290 = vshll.u32 %v289, 30
    %v291 = vsub.s32 %v287, %v290
    %vm292 = vcmp.lt.s32.totalorder %v291, 0
    %v293 = vsub.s32 0, %v291
    %v294 = vsel %vm292, %v293, %v291
    %v295 = vclz %v294
    %v296 = vsub.s32 %v295, 2
    %vm297 = vcmp.gt.s32.totalorder 0, %v296
    %v298 = vsel %vm297, 0, %v296
    %v299 = vsub.s32 32, %v298
    %v300 = vshll.u32 %v291, %v298
    %v301 = vshrl.u32 %v283, %v299
    %v302 = vor.u32 %v300, %v301
    %v303 = vsub.s32 4294967266, %v298
    %v304 = vadd.s32 %v303, 127
    %v305 = vshll.u32 %v304, 23
    %v306 = vor.u32 4788187, %v305
    %v307 = vand.u32 2147483647, %v306
    %v309 = vcvt.s32.f32 %v302
    %v310 = vmul.f32 %v309, %v307
    %v311 = vxor.u32 %v310, 2147483648
    %v312 = vsel %vm191, %v311, %v310
    %v313 = vsub.s32 4, %v289
    %v314 = vsel %vm191, %v313, %v289
    %v315 = vsel %vm190, %v25, %v312
    %v316 = vsel %vm190, 0, %v314
    %v317 = vmul.f32 %v315, %v315
    %v318 = vmul.f32 %v317, -0.001358992
    %v319 = vadd.f32 %v318, 0.041655596
    %v320 = vmul.f32 %v317, %v319
    %v321 = vadd.f32 %v320, -0.4999988
    %v322 = vmul.f32 %v317, %v321
    %v323 = vadd.f32 1.0, %v322
    %v324 = vmul.f32 %v315, %v315
    %v325 = vmul.f32 %v324, -0.00019511016
    %v326 = vadd.f32 %v325, 0.008332121
    %v327 = vmul.f32 %v324, %v326
    %v328 = vadd.f32 %v327, -0.16666654
    %v329 = vmul.f32 %v324, %v328
    %v330 = vadd.f32 %v329, 1.0
    %v331 = vmul.f32 %v330, %v315
    %vm332 = vweird.f32 %v25
    %v333 = vand.u32 %v316, 3
    %vm334 = vcmp.lt.s32.totalorder %v333, 2
    %vm335 = vcmp.eq.s32.totalorder %v333, 0
    %v336 = vxor.u32 %v331, 2147483648
    %v337 = vsel %vm335, %v323, %v336
    %vm338 = vcmp.eq.s32.totalorder %v333, 2
    %v339 = vxor.u32 %v323, 2147483648
    %v340 = vsel %vm338, %v339, %v331
    %v341 = vsel %vm334, %v337, %v340
    %v342 = vsel %vm332, nan, %v341
    %v343 = vmul.f32 %v27, 0.05
    %v344 = vadd.f32 %v25, %v343
    %v345 = vmul.f32 %v188, -9.81
    %v346 = vmul.f32 %v27, 0.1
    %v347 = vsub.f32 %v345, %v346
    %v348 = vadd.f32 %v347, %v29
    %v349 = vmul.f32 %v348, 0.05
    %v350 = vadd.f32 %v27, %v349
    %v351 = vand.u32 2147483647, %v344
    %vm352 = vcmp.le.f32.partialorder %v351, 0.7853982
    %vm353 = vcmp.lt.s32.totalorder %v344, 0
    %v354 = vand.u32 %v344, 2139095040
    %v355 = vshrl.u32 %v354, 23
    %v356 = vsub.s32 %v355, 127
    %v357 = vand.u32 2147483647, %v344
    %v358 = vand.u32 %v357, 8388607
    %v359 = vor.u32 %v358, 8388608
    %v360 = vsub.s32 0, %v359
    %v361 = vadd.s32 %v356, 1
    %vm362 = vcmp.gt.s32.totalorder %v361, 0
    %v363 = vsel %vm362, %v361, 0
    %v364 = vshrl.u32 %v363, 5
    %v365 = vand.u32 %v363, 31
    %v366 = vsub.s32 32, %v365
    %v367 = vshrl.u32 683565275, %v366
    %v368 = vshll.u32 683565275, %v365
    %v369 = vshrl.u32 2475754826, %v366
    %v370 = vor.u32 %v368, %v369
    %v371 = vshll.u32 2475754826, %v365
    %v372 = vshrl.u32 2131351028, %v366
    %v373 = vor.u32 %v371, %v372
    %v374 = vshll.u32 2131351028, %v365
    %v375 = vshrl.u32 2102212464, %v366
    %v376 = vor.u32 %v374, %v375
    %v377 = vshll.u32 2102212464, %v365
    %v378 = vshrl.u32 920167782, %v366
    %v379 = vor.u32 %v377, %v378
    %v380 = vshll.u32 920167782, %v365
    %v381 = vshrl.u32 1326507024, %v366
    %v382 = vor.u32 %v380, %v381
    %vm383 = vcmp.lt.s32.totalorder %v364, 1
    %vm384 = vcmp.lt.s32.totalorder %v364, 2
    %vm385 = vcmp.lt.s32.totalorder %v364, 3
    %vm386 = vcmp.lt.s32.totalorder %v364, 4
    %v387 = vsel %vm383, %v367, %v370
    %v388 = vsel %vm386, %v376, 2102212464
    %v389 = vsel %vm385, %v373, %v388
    %v390 = vsel %vm384, %v387, %v389
    %v391 = vsel %vm383, %v370, %v373
    %v392 = vsel %vm386, %v379, 920167782
    %v393 = vsel %vm385, %v376, %v392
    %v394 = vsel %vm384, %v391, %v393
    %v395 = vsel %vm383, %v373, %v376
    %v396 = vsel %vm386, %v382, 1326507024
    %v397 = vsel %vm385, %v379, %v396
    %v398 = vsel %vm384, %v395, %v397
    %v399 = vshll.u32 %v359, 8
    %v400 = vand.u32 %v399, 65535
    %v401 = vshrl.u32 %v399, 16
    %v402 = vand.u32 %v398, 65535
    %v403 = vshrl.u32 %v398, 16
    %v404 = vmul.u32 %v400, %v402
    %v405 = vmul.u32 %v400, %v403
    %v406 = vmul.u32 %v401, %v402
    %v407 = vmul.u32 %v401, %v403
    %v408 = vshll.u32 %v405, 16
    %v409 = vshrl.u32 %v405, 16
    %v410 = vshll.u32 %v406, 16
    %v411 = vshrl.u32 %v406, 16
    %vm412 = vc.u32 %v404, %v408
    %v413 = vsel %vm412, 1, 0
    %v414 = vadd.s32 %v404, %v408
    %v415 = vadd.s32 %v407, %v413
    %vm416 = vc.u32 %v414, %v410
    %v417 = vsel %vm416, 1, 0
    %v418 = vadd.s32 %v414, %v410
    %v419 = vadd.s32 %v415, %v417
    %v420 = vadd.s32 %v419, %v409
    %v421 = vadd.s32 %v420, %v411
    %v422 = vand.u32 %v399, 65535
    %v423 = vshrl.u32 %v399, 16
    %v424 = vand.u32 %v394, 65535
    %v425 = vshrl.u32 %v394, 16
    %v426 = vmul.u32 %v422, %v424
    %v427 = vmul.u32 %v422, %v425
    %v428 = vmul.u32 %v423, %v424
    %v429 = vmul.u32 %v423, %v425
    %v430 = vshll.u32 %v427, 16
    %v431 = vshrl.u32 %v427, 16
    %v432 = vshll.u32 %v428, 16
    %v433 = vshrl.u32 %v428, 16
    %vm434 = vc.u32 %v426, %v430
    %v435 = vsel %vm434, 1, 0
    %v436 = vadd.s32 %v426, %v430
    %v437 = vadd.s32 %v429, %v435
    %vm438 = vc.u32 %v436, %v432
    %v439 = vsel %vm438, 1, 0
    %v440 = vadd.s32 %v436, %v432
    %v441 = vadd.s32 %v437, %v439
    %v442 = vadd.s32 %v441, %v431
    %v443 = vadd.s32 %v442, %v433
    %v444 = vmul.u32 %v399, %v390
    %v445 = vadd.s32 %v421, %v440
    %vm446 = vc.u32 %v421, %v440
    %v447 = vadd.s32 %v443, 1
    %v448 = vsel %vm446, %v447, %v443
    %v449 = vadd.s32 %v444, %v448
    %v450 = vadd.s32 %v449, 536870912
    %v451 = vshrl.u32 %v450, 30
    %v452 = vshll.u32 %v451, 30
    %v453 = vsub.s32 %v449, %v452
    %vm454 = vcmp.lt.s32.totalorder %v453, 0
    %v455 = vsub.s32 0, %v453
    %v456 = vsel %vm454, %v455, %v453
    %v457 = vclz %v456
    %v458 = vsub.s32 %v457, 2
    %vm459 = vcmp.gt.s32.totalorder 0, %v458
    %v460 = vsel %vm459, 0, %v458
    %v461 = vsub.s32 32, %v460
    %v462 = vshll.u32 %v453, %v460
    %v463 = vshrl.u32 %v445, %v461
    %v464 = vor.u32 %v462, %v463
    %v465 = vsub.s32 4294967266, %v460
    %v466 = vadd.s32 %v465, 127
    %v467 = vshll.u32 %v466, 23
    %v468 = vor.u32 4788187, %v467
    %v469 = vand.u32 2147483647, %v468
    %v471 = vcvt.s32.f32 %v464
    %v472 = vmul.f32 %v471, %v469
    %v473 = vxor.u32 %v472, 2147483648
    %v474 = vsel %vm353, %v473, %v472
    %v475 = vsub.s32 4, %v451
    %v476 = vsel %vm353, %v475, %v451
    %v477 = vsel %vm352, %v344, %v474
    %v478 = vsel %vm352, 0, %v476
    %v479 = vmul.f32 %v477, %v477
    %v480 = vmul.f32 %v479, -0.001358992
    %v481 = vadd.f32 %v480, 0.041655596
    %v482 = vmul.f32 %v479, %v481
    %v483 = vadd.f32 %v482, -0.4999988
    %v484 = vmul.f32 %v479, %v483
    %v485 = vadd.f32 1.0, %v484
    %v486 = vmul.f32 %v477, %v477
    %v487 = vmul.f32 %v486, -0.00019511016
    %v488 = vadd.f32 %v487, 0.008332121
    %v489 = vmul.f32 %v486, %v488
    %v490 = vadd.f32 %v489, -0.16666654
    %v491 = vmul.f32 %v486, %v490
    %v492 = vadd.f32 %v491, 1.0
    %v493 = vmul.f32 %v492, %v477
    %vm494 = vweird.f32 %v344
    %v495 = vadd.s32 %v478, 3
    %v496 = vand.u32 %v495, 3
    %vm497 = vcmp.lt.s32.totalorder %v496, 2
    %vm498 = vcmp.eq.s32.totalorder %v496, 0
    %v499 = vxor.u32 %v493, 2147483648
    %v500 = vsel %vm498, %v485, %v499
    %vm501 = vcmp.eq.s32.totalorder %v496, 2
    %v502 = vxor.u32 %v485, 2147483648
    %v503 = vsel %vm501, %v502, %v493
    %v504 = vsel %vm497, %v500, %v503
    %v505 = vsel %vm494, nan, %v504
    %v506 = vand.u32 2147483647, %v344
    %vm507 = vcmp.le.f32.partialorder %v506, 0.7853982
    %vm508 = vcmp.lt.s32.totalorder %v344, 0
    %v509 = vand.u32 %v344, 2139095040
    %v510 = vshrl.u32 %v509, 23
    %v511 = vsub.s32 %v510, 127
    %v512 = vand.u32 2147483647, %v344
    %v513 = vand.u32 %v512, 8388607
    %v514 = vor.u32 %v513, 8388608
    %v515 = vsub.s32 0, %v514
    %v516 = vadd.s32 %v511, 1
    %vm517 = vcmp.gt.s32.totalorder %v516, 0
    %v518 = vsel %vm517, %v516, 0
    %v519 = vshrl.u32 %v518, 5
    %v520 = vand.u32 %v518, 31
    %v521 = vsub.s32 32, %v520
    %v522 = vshrl.u32 683565275, %v521
    %v523 = vshll.u32 683565275, %v520
    %v524 = vshrl.u32 2475754826, %v521
    %v525 = vor.u32 %v523, %v524
    %v526 = vshll.u32 2475754826, %v520
    %v527 = vshrl.u32 2131351028, %v521
    %v528 = vor.u32 %v526, %v527
    %v529 = vshll.u32 2131351028, %v520
    %v530 = vshrl.u32 2102212464, %v521
    %v531 = vor.u32 %v529, %v530
    %v532 = vshll.u32 2102212464, %v520
    %v533 = vshrl.u32 920167782, %v521
    %v534 = vor.u32 %v532, %v533
    %v535 = vshll.u32 920167782, %v520
    %v536 = vshrl.u32 1326507024, %v521
    %v537 = vor.u32 %v535, %v536
    %vm538 = vcmp.lt.s32.totalorder %v519, 1
    %vm539 = vcmp.lt.s32.totalorder %v519, 2
    %vm540 = vcmp.lt.s32.totalorder %v519, 3
    %vm541 = vcmp.lt.s32.totalorder %v519, 4
    %v542 = vsel %vm538, %v522, %v525
    %v543 = vsel %vm541, %v531, 2102212464
    %v544 = vsel %vm540, %v528, %v543
    %v545 = vsel %vm539, %v542, %v544
    %v546 = vsel %vm538, %v525, %v528
    %v547 = vsel %vm541, %v534, 920167782
    %v548 = vsel %vm540, %v531, %v547
    %v549 = vsel %vm539, %v546, %v548
    %v550 = vsel %vm538, %v528, %v531
    %v551 = vsel %vm541, %v537, 1326507024
    %v552 = vsel %vm540, %v534, %v551
    %v553 = vsel %vm539, %v550, %v552
    %v554 = vshll.u32 %v514, 8
    %v555 = vand.u32 %v554, 65535
    %v556 = vshrl.u32 %v554, 16
    %v557 = vand.u32 %v553, 65535
    %v558 = vshrl.u32 %v553, 16
    %v559 = vmul.u32 %v555, %v557
    %v560 = vmul.u32 %v555, %v558
    %v561 = vmul.u32 %v556, %v557
    %v562 = vmul.u32 %v556, %v558
    %v563 = vshll.u32 %v560, 16
    %v564 = vshrl.u32 %v560, 16
    %v565 = vshll.u32 %v561, 16
    %v566 = vshrl.u32 %v561, 16
    %vm567 = vc.u32 %v559, %v563
    %v568 = vsel %vm567, 1, 0
    %v569 = vadd.s32 %v559, %v563
    %v570 = vadd.s32 %v562, %v568
    %vm571 = vc.u32 %v569, %v565
    %v572 = vsel %vm571, 1, 0
    %v573 = vadd.s32 %v569, %v565
    %v574 = vadd.s32 %v570, %v572
    %v575 = vadd.s32 %v574, %v564
    %v576 = vadd.s32 %v575, %v566
    %v577 = vand.u32 %v554, 65535
    %v578 = vshrl.u32 %v554, 16
    %v579 = vand.u32 %v549, 65535
    %v580 = vshrl.u32 %v549, 16
    %v581 = vmul.u32 %v577, %v579
    %v582 = vmul.u32 %v577, %v580
    %v583 = vmul.u32 %v578, %v579
    %v584 = vmul.u32 %v578, %v580
    %v585 = vshll.u32 %v582, 16
    %v586 = vshrl.u32 %v582, 16
    %v587 = vshll.u32 %v583, 16
    %v588 = vshrl.u32 %v583, 16
    %vm589 = vc.u32 %v581, %v585
    %v590 = vsel %vm589, 1, 0
    %v591 = vadd.s32 %v581, %v585
    %v592 = vadd.s32 %v584, %v590
    %vm593 = vc.u32 %v591, %v587
    %v594 = vsel %vm593, 1, 0
    %v595 = vadd.s32 %v591, %v587
    %v596 = vadd.s32 %v592, %v594
    %v597 = vadd.s32 %v596, %v586
    %v598 = vadd.s32 %v597, %v588
    %v599 = vmul.u32 %v554, %v545
    %v600 = vadd.s32 %v576, %v595
    %vm601 = vc.u32 %v576, %v595
    %v602 = vadd.s32 %v598, 1
    %v603 = vsel %vm601, %v602, %v598
    %v604 = vadd.s32 %v599, %v603
    %v605 = vadd.s32 %v604, 536870912
    %v606 = vshrl.u32 %v605, 30
    %v607 = vshll.u32 %v606, 30
    %v608 = vsub.s32 %v604, %v607
    %vm609 = vcmp.lt.s32.totalorder %v608, 0
    %v610 = vsub.s32 0, %v608
    %v611 = vsel %vm609, %v610, %v608
    %v612 = vclz %v611
    %v613 = vsub.s32 %v612, 2
    %vm614 = vcmp.gt.s32.totalorder 0, %v613
    %v615 = vsel %vm614, 0, %v613
    %v616 = vsub.s32 32, %v615
    %v617 = vshll.u32 %v608, %v615
    %v618 = vshrl.u32 %v600, %v616
    %v619 = vor.u32 %v617, %v618
    %v620 = vsub.s32 4294967266, %v615
    %v621 = vadd.s32 %v620, 127
    %v622 = vshll.u32 %v621, 23
    %v623 = vor.u32 4788187, %v622
    %v624 = vand.u32 2147483647, %v623
    %v626 = vcvt.s32.f32 %v619
    %v627 = vmul.f32 %v626, %v624
    %v628 = vxor.u32 %v627, 2147483648
    %v629 = vsel %vm508, %v628, %v627
    %v630 = vsub.s32 4, %v606
    %v631 = vsel %vm508, %v630, %v606
    %v632 = vsel %vm507, %v344, %v629
    %v633 = vsel %vm507, 0, %v631
    %v634 = vmul.f32 %v632, %v632
    %v635 = vmul.f32 %v634, -0.001358992
    %v636 = vadd.f32 %v635, 0.041655596
    %v637 = vmul.f32 %v634, %v636
    %v638 = vadd.f32 %v637, -0.4999988
    %v639 = vmul.f32 %v634, %v638
    %v640 = vadd.f32 1.0, %v639
    %v641 = vmul.f32 %v632, %v632
    %v642 = vmul.f32 %v641, -0.00019511016
    %v643 = vadd.f32 %v642, 0.008332121
    %v644 = vmul.f32 %v641, %v643
    %v645 = vadd.f32 %v644, -0.16666654
    %v646 = vmul.f32 %v641, %v645
    %v647 = vadd.f32 %v646, 1.0
    %v648 = vmul.f32 %v647, %v632
    %vm649 = vweird.f32 %v344
    %v650 = vand.u32 %v633, 3
    %vm651 = vcmp.lt.s32.totalorder %v650, 2
    %vm652 = vcmp.eq.s32.totalorder %v650, 0
    %v653 = vxor.u32 %v648, 2147483648
    %v654 = vsel %vm652, %v640, %v653
    %vm655 = vcmp.eq.s32.totalorder %v650, 2
    %v656 = vxor.u32 %v640, 2147483648
    %v657 = vsel %vm655, %v656, %v648
    %v658 = vsel %vm651, %v654, %v657
    %v659 = vsel %vm649, nan, %v658
    %v660 = vsub.f32 %v31, %v505
    %v661 = vmul.f32 %v659, %v660
    %v662 = vsub.f32 %v33, %v659
    %v663 = vmul.f32 %v505, %v662
    %v664 = vsub.f32 %v661, %v663
    %v665 = vmul.f32 %v664, 0.7677124
    %v666 = vadd.f32 %v344, %v665
    %667 = vst [vmem:[#allocation5] sm:$0xff] %v666
    %v668 = vmul.f32 %v342, -0.4905
    %v669 = vmul.f32 %v668, 0.5032404
    %v670 = vadd.f32 %v669, 0.6404708
    %v671 = vmul.f32 %v670, %v664
    %v672 = vadd.f32 %v350, %v671
    %s673 = scalar_lea.vmem [#allocation5], 8
    %674 = vst [vmem:[%s673] sm:$0xff] %v672
    // Predicated region
    $region10: #{tpu_custom_call.1} parent=1 // pred_check
      _
    $region11: #{tpu_custom_call.1} parent=1 // pred_check_branch
      %676 = sbr.rel (0) target = $region13
    $region12: #{tpu_custom_call.1} parent=1 // pred_region
      %678 = vsyncadd [#allocation4], 0
      %s679 = sshll.u32 [#allocation5], 4
      %s680 = int_to_ptr.vmem [resolvable:$true] %s679
      %s681 = sshll.u32 %s1, 4
      %s682 = int_to_ptr.hbm [resolvable:$true] %s681
      %687 = dma.vmem_to_hbm [thread:$0]  %s680, 256, %s682, [#allocation4], 128, 128, 8
    $region13: #{tpu_custom_call.1} parent=1 // pred_fallthru
      _
    // Predicated region
    $region14: #{tpu_custom_call.1} parent=1 // pred_check
      _
    $region15: #{tpu_custom_call.1} parent=1 // pred_check_branch
      %689 = sbr.rel (0) target = $region17
    $region16: #{tpu_custom_call.1} parent=1 // pred_region
      %691 = dma.done [#allocation4], 256
    $region17: #{tpu_custom_call.1} parent=1 // pred_fallthru
      _
    %692 = vsyncpa [#allocation3], 1
    %693 = vsyncpa [#allocation4], 1

</llo_original>
